<compile_context>
chip_gen: v6e
topology: v6e:2x2x1
jax: 0.10.0
libtpu: 0.0.40
codegen_flags: <defaults>
</compile_context>

<pallas_src>
import functools

import jax
import jax.numpy as jnp
from jax.experimental import pallas as pl
from jax.experimental.pallas import tpu as pltpu

HID = 256   # fc1 output width
EMB = 64    # fc2 output width (embedding size)


# ---------------------------------------------------------------------------
# Kernel
# ---------------------------------------------------------------------------
def _siamese_kernel(x_ref, w1_ref, b1_ref, w2_ref, b2_ref, w3_ref, b3_ref,
                    emb_ref, out_ref):
    """Fused: [x1; x2] -> fc1(Lin+BN+ReLU) -> fc2(Lin+BN+Sigmoid) ->
    squared distance -> fc3 (VPU reduce + Sigmoid)."""
    _, tb, nch = x_ref.shape                     # (2, TILE_B, nch)

    # Both branches in one matmul chain (shared weights -> siamese).
    # Sublane-aligned reshape (TILE_B % 8 == 0) is layout-trivial.
    x = x_ref[...].reshape(2 * tb, nch).astype(jnp.bfloat16)

    # fc1: Linear (+folded BN) + ReLU.  bf16 MXU operands, f32 accumulate.
    h = jnp.dot(x, w1_ref[...], preferred_element_type=jnp.float32)
    h = jnp.maximum(h + b1_ref[...], 0.0)        # f32 epilogue

    # fc2: Linear (+folded BN) + Sigmoid.
    z = jnp.dot(h.astype(jnp.bfloat16), w2_ref[...],
                preferred_element_type=jnp.float32)
    e = jax.nn.sigmoid(z + b2_ref[...])          # (2*TILE_B, EMB) f32

    e1 = e[:tb]                                  # branch 1 embeddings
    e2 = e[tb:]                                  # branch 2 embeddings

    # Lane-dense fused embedding output: [e1 | e2] in one 128-wide block.
    emb_ref[:, 0:EMB] = e1.astype(emb_ref.dtype)
    emb_ref[:, EMB:2 * EMB] = e2.astype(emb_ref.dtype)

    # distances = (e2 - e1)^2 ; fc3 as VPU mul + lane reduce (no N=1 matmul).
    d = (e2 - e1) * (e2 - e1)
    logits = jnp.sum(d * w3_ref[...], axis=-1, keepdims=True) + b3_ref[...]
    out_ref[...] = jax.nn.sigmoid(logits).astype(out_ref.dtype)


# ---------------------------------------------------------------------------
# Wrapper
# ---------------------------------------------------------------------------
def _round_up(x, m):
    return ((x + m - 1) // m) * m


@functools.partial(jax.jit, static_argnames=("tile_b",))
def attacker_siamese2_forward(x1, x2, params, *, tile_b=512):
    B, nch = x1.shape

    # Batch tile: multiple of 8 (sublane), capped at tile_b; pad B to fit.
    tb = min(tile_b, _round_up(B, 8))
    padded = _round_up(B, tb)
    if padded != B:
        pad = padded - B
        x1 = jnp.pad(x1, ((0, pad), (0, 0)))
        x2 = jnp.pad(x2, ((0, pad), (0, 0)))
    x12 = jnp.stack([x1, x2], axis=0)                    # (2, padded, nch)
    nb = padded // tb

    # Weights: bf16 for MXU operands, biases / fc3 row stay f32.
    w1 = params["w1"].astype(jnp.bfloat16)               # (nch, 256)
    b1 = params["b1"].reshape(1, HID).astype(jnp.float32)
    w2 = params["w2"].astype(jnp.bfloat16)               # (256, 64)
    b2 = params["b2"].reshape(1, EMB).astype(jnp.float32)
    w3 = params["w3"].reshape(1, EMB).astype(jnp.float32)
    b3 = params["b3"].reshape(1, 1).astype(jnp.float32)

    in_specs = [
        pl.BlockSpec((2, tb, nch), lambda i: (0, i, 0)),   # x tiles
        pl.BlockSpec((nch, HID), lambda i: (0, 0)),        # w1 (resident)
        pl.BlockSpec((1, HID), lambda i: (0, 0)),          # b1
        pl.BlockSpec((HID, EMB), lambda i: (0, 0)),        # w2
        pl.BlockSpec((1, EMB), lambda i: (0, 0)),          # b2
        pl.BlockSpec((1, EMB), lambda i: (0, 0)),          # w3 row
        pl.BlockSpec((1, 1), lambda i: (0, 0)),            # b3
    ]
    out_shape = (
        jax.ShapeDtypeStruct((padded, 2 * EMB), jnp.float32),  # [e1 | e2]
        jax.ShapeDtypeStruct((padded, 1), jnp.float32),        # output
    )
    out_specs = (
        pl.BlockSpec((tb, 2 * EMB), lambda i: (i, 0)),
        pl.BlockSpec((tb, 1), lambda i: (i, 0)),
    )

    flops = 2 * (2 * padded) * (nch * HID + HID * EMB) + 6 * padded * EMB
    transcendentals = 2 * padded * EMB + padded
    bytes_accessed = (
        2 * padded * nch * 4                                # x (f32 in HBM)
        + (nch * HID + HID * EMB) * 2                       # bf16 weights
        + (HID + EMB + EMB + 1) * 4                         # biases / w3 row
        + padded * (2 * EMB) * 4 + padded * 4               # outputs
    )

    emb, out = pl.pallas_call(
        _siamese_kernel,
        out_shape=out_shape,
        grid=(nb,),
        in_specs=in_specs,
        out_specs=out_specs,
        compiler_params=pltpu.CompilerParams(
            dimension_semantics=("parallel",)),
        cost_estimate=pl.CostEstimate(
            flops=int(flops),
            transcendentals=int(transcendentals),
            bytes_accessed=int(bytes_accessed)),
    )(x12, w1, b1, w2, b2, w3, b3)

    e1 = emb[:B, 0:EMB]
    e2 = emb[:B, EMB:2 * EMB]
    return [e1, e2], out[:B]


# ---------------------------------------------------------------------------
# Parameters (BN folded into Linear, inference mode)
# ---------------------------------------------------------------------------
def _fold_bn(w, b, gamma, beta, mean, var, eps=1e-5):
    s = gamma / jnp.sqrt(var + eps)
    return w * s[None, :], (b - mean) * s + beta


def make_params(nch_info, key):
    ks = jax.random.split(key, 12)
    f32 = jnp.float32

    def lin(kw, kb, fan_in, fan_out):
        bound = 1.0 / jnp.sqrt(jnp.asarray(fan_in, f32))
        w = jax.random.uniform(kw, (fan_in, fan_out), f32, -bound, bound)
        b = jax.random.uniform(kb, (fan_out,), f32, -bound, bound)
        return w, b

    w1, b1 = lin(ks[0], ks[1], nch_info, HID)
    g1 = 1.0 + 0.1 * jax.random.normal(ks[2], (HID,), f32)
    be1 = 0.1 * jax.random.normal(ks[3], (HID,), f32)
    m1 = 0.05 * jax.random.normal(ks[4], (HID,), f32)
    v1 = 1.0 + 0.1 * jax.random.uniform(ks[5], (HID,), f32)

    w2, b2 = lin(ks[6], ks[7], HID, EMB)
    g2 = 1.0 + 0.1 * jax.random.normal(ks[8], (EMB,), f32)
    be2 = 0.1 * jax.random.normal(ks[9], (EMB,), f32)
    m2 = 0.05 * jax.random.normal(ks[10], (EMB,), f32)
    v2 = 1.0 + 0.1 * jax.random.uniform(ks[11], (EMB,), f32)

    kw3, kb3 = jax.random.split(jax.random.fold_in(key, 99))
    w3, b3 = lin(kw3, kb3, EMB, 1)

    w1f, b1f = _fold_bn(w1, b1, g1, be1, m1, v1)
    w2f, b2f = _fold_bn(w2, b2, g2, be2, m2, v2)
    return dict(w1=w1f, b1=b1f, w2=w2f, b2=b2f, w3=w3, b3=b3)


# ---------------------------------------------------------------------------
# References
# ---------------------------------------------------------------------------
def _reference_f32(x1, x2, params):
    """Pure f32 reference (module semantics, inference-mode BN)."""
    fc1 = lambda x: jnp.maximum(x @ params["w1"] + params["b1"], 0.0)
    fc2 = lambda h: jax.nn.sigmoid(h @ params["w2"] + params["b2"])
    e1, e2 = fc2(fc1(x1)), fc2(fc1(x2))
    d = (e2 - e1) ** 2
    return [e1, e2], jax.nn.sigmoid(d @ params["w3"] + params["b3"])


def _reference_bf16(x1, x2, params):
    """Reference with the same bf16 matmul operands as the kernel."""
    w1 = params["w1"].astype(jnp.bfloat16)
    w2 = params["w2"].astype(jnp.bfloat16)
    w3 = params["w3"].reshape(1, EMB)
    b3 = params["b3"].reshape(1, 1)

    def fc1(x):
        return jnp.maximum(
            jnp.dot(x.astype(jnp.bfloat16), w1,
                    preferred_element_type=jnp.float32) + params["b1"], 0.0)

    def fc2(h):
        return jax.nn.sigmoid(
            jnp.dot(h.astype(jnp.bfloat16), w2,
                    preferred_element_type=jnp.float32) + params["b2"])

    e1, e2 = fc2(fc1(x1)), fc2(fc1(x2))
    d = (e2 - e1) ** 2
    out = jax.nn.sigmoid(jnp.sum(d * w3, axis=-1, keepdims=True) + b3)
    return [e1, e2], out


# ---------------------------------------------------------------------------
# Demo
# ---------------------------------------------------------------------------
if __name__ == "__main__":
    B = 8
    NCH_INFO = 32

    key = jax.random.PRNGKey(0)
    k_x1, k_x2, k_p = jax.random.split(key, 3)
    x1 = jax.random.normal(k_x1, (B, NCH_INFO), jnp.float32)
    x2 = jax.random.normal(k_x2, (B, NCH_INFO), jnp.float32)
    params = make_params(NCH_INFO, k_p)

    (e1, e2), out = attacker_siamese2_forward(x1, x2, params)
    jax.block_until_ready((e1, e2, out))

    # Tight check vs. a reference that uses identical bf16 MXU operands.
    (te1, te2), tout = _reference_bf16(x1, x2, params)
    assert jnp.max(jnp.abs(e1 - te1)) < 1e-3, "embedding1 mismatch (bf16 ref)"
    assert jnp.max(jnp.abs(e2 - te2)) < 1e-3, "embedding2 mismatch (bf16 ref)"
    assert jnp.max(jnp.abs(out - tout)) < 1e-3, "output mismatch (bf16 ref)"

    # Loose check vs. the full-precision module semantics.
    (re1, re2), rout = _reference_f32(x1, x2, params)
    assert jnp.max(jnp.abs(e1 - re1)) < 5e-2, "embedding1 mismatch (f32 ref)"
    assert jnp.max(jnp.abs(e2 - re2)) < 5e-2, "embedding2 mismatch (f32 ref)"
    assert jnp.max(jnp.abs(out - rout)) < 5e-2, "output mismatch (f32 ref)"

    print("KERNEL_OK")
</pallas_src>

<mosaic_0001>
module attributes {stable_mosaic.version = 11 : i64} {
  func.func @_siamese_kernel(%arg0: i32, %arg1: memref<2x8x32xf32, #tpu.memory_space<vmem>>, %arg2: memref<32x256xbf16, #tpu.memory_space<vmem>>, %arg3: memref<1x256xf32, #tpu.memory_space<vmem>>, %arg4: memref<256x64xbf16, #tpu.memory_space<vmem>>, %arg5: memref<1x64xf32, #tpu.memory_space<vmem>>, %arg6: memref<1x64xf32, #tpu.memory_space<vmem>>, %arg7: memref<1x1xf32, #tpu.memory_space<vmem>>, %arg8: memref<8x128xf32, #tpu.memory_space<vmem>>, %arg9: memref<8x1xf32, #tpu.memory_space<vmem>>) attributes {dimension_semantics = [#tpu.dimension_semantics<parallel>], iteration_bounds = array<i64: 1>, scalar_prefetch = 0 : i64, scratch_operands = 0 : i64, tpu.core_type = #tpu.core_type<tc>, window_params = [{transform_indices = @transform_0, window_bounds = array<i64: 2, 8, 32>}, {pipeline_mode = #tpu.pipeline_mode<synchronous>, transform_indices = @transform_1, window_bounds = array<i64: 32, 256>}, {pipeline_mode = #tpu.pipeline_mode<synchronous>, transform_indices = @transform_2, window_bounds = array<i64: 1, 256>}, {pipeline_mode = #tpu.pipeline_mode<synchronous>, transform_indices = @transform_3, window_bounds = array<i64: 256, 64>}, {pipeline_mode = #tpu.pipeline_mode<synchronous>, transform_indices = @transform_4, window_bounds = array<i64: 1, 64>}, {pipeline_mode = #tpu.pipeline_mode<synchronous>, transform_indices = @transform_5, window_bounds = array<i64: 1, 64>}, {pipeline_mode = #tpu.pipeline_mode<synchronous>, transform_indices = @transform_6, window_bounds = array<i64: 1, 1>}, {transform_indices = @transform_7, window_bounds = array<i64: 8, 128>}, {transform_indices = @transform_8, window_bounds = array<i64: 8, 1>}]} {
    %c0 = arith.constant 0 : index
    %c0_0 = arith.constant 0 : index
    %c0_1 = arith.constant 0 : index
    %0 = vector.load %arg1[%c0, %c0_0, %c0_1] : memref<2x8x32xf32, #tpu.memory_space<vmem>>, vector<2x8x32xf32>
    %1 = vector.shape_cast %0 : vector<2x8x32xf32> to vector<16x32xf32>
    %2 = arith.truncf %1 : vector<16x32xf32> to vector<16x32xbf16>
    %c0_2 = arith.constant 0 : index
    %c0_3 = arith.constant 0 : index
    %3 = vector.load %arg2[%c0_2, %c0_3] : memref<32x256xbf16, #tpu.memory_space<vmem>>, vector<32x256xbf16>
    %cst = arith.constant dense<0.000000e+00> : vector<16x256xf32>
    %4 = tpu.matmul %2, %3, %cst {dimension_numbers = #tpu.dot_dimension_numbers<[1], [0], [0], [1], [0, 0, 1, 1], [], []>} : vector<16x32xbf16>, vector<32x256xbf16>, vector<16x256xf32> -> vector<16x256xf32>
    %c0_4 = arith.constant 0 : index
    %c0_5 = arith.constant 0 : index
    %5 = vector.load %arg3[%c0_4, %c0_5] : memref<1x256xf32, #tpu.memory_space<vmem>>, vector<1x256xf32>
    %6 = vector.broadcast %5 : vector<1x256xf32> to vector<16x256xf32>
    %7 = arith.addf %4, %6 : vector<16x256xf32>
    %cst_6 = arith.constant 0.000000e+00 : f32
    %8 = vector.broadcast %cst_6 : f32 to vector<16x256xf32>
    %9 = arith.maximumf %7, %8 : vector<16x256xf32>
    %10 = arith.truncf %9 : vector<16x256xf32> to vector<16x256xbf16>
    %c0_7 = arith.constant 0 : index
    %c0_8 = arith.constant 0 : index
    %11 = vector.load %arg4[%c0_7, %c0_8] : memref<256x64xbf16, #tpu.memory_space<vmem>>, vector<256x64xbf16>
    %cst_9 = arith.constant dense<0.000000e+00> : vector<16x64xf32>
    %12 = tpu.matmul %10, %11, %cst_9 {dimension_numbers = #tpu.dot_dimension_numbers<[1], [0], [0], [1], [0, 0, 1, 1], [], []>} : vector<16x256xbf16>, vector<256x64xbf16>, vector<16x64xf32> -> vector<16x64xf32>
    %c0_10 = arith.constant 0 : index
    %c0_11 = arith.constant 0 : index
    %13 = vector.load %arg5[%c0_10, %c0_11] : memref<1x64xf32, #tpu.memory_space<vmem>>, vector<1x64xf32>
    %14 = vector.broadcast %13 : vector<1x64xf32> to vector<16x64xf32>
    %15 = arith.addf %12, %14 : vector<16x64xf32>
    %16 = arith.negf %15 : vector<16x64xf32>
    %17 = math.exp %16 : vector<16x64xf32>
    %cst_12 = arith.constant 1.000000e+00 : f32
    %18 = vector.broadcast %cst_12 : f32 to vector<16x64xf32>
    %19 = arith.addf %18, %17 : vector<16x64xf32>
    %20 = arith.divf %18, %19 : vector<16x64xf32>
    %21 = vector.extract_strided_slice %20 {offsets = [0, 0], sizes = [8, 64], strides = [1, 1]} : vector<16x64xf32> to vector<8x64xf32>
    %22 = vector.extract_strided_slice %20 {offsets = [8, 0], sizes = [8, 64], strides = [1, 1]} : vector<16x64xf32> to vector<8x64xf32>
    %c0_13 = arith.constant 0 : index
    %c0_14 = arith.constant 0 : index
    %23 = vector.load %arg8[%c0_13, %c0_14] : memref<8x128xf32, #tpu.memory_space<vmem>>, vector<8x64xf32>
    tpu.vector_store %arg8[%c0_13, %c0_14], %21 {strides = array<i32>} : memref<8x128xf32, #tpu.memory_space<vmem>>, vector<8x64xf32>,
    %c0_15 = arith.constant 0 : index
    %c64 = arith.constant 64 : index
    %24 = vector.load %arg8[%c0_15, %c64] : memref<8x128xf32, #tpu.memory_space<vmem>>, vector<8x64xf32>
    tpu.vector_store %arg8[%c0_15, %c64], %22 {strides = array<i32>} : memref<8x128xf32, #tpu.memory_space<vmem>>, vector<8x64xf32>,
    %25 = arith.subf %22, %21 : vector<8x64xf32>
    %26 = arith.subf %22, %21 : vector<8x64xf32>
    %27 = arith.mulf %25, %26 : vector<8x64xf32>
    %c0_16 = arith.constant 0 : index
    %c0_17 = arith.constant 0 : index
    %28 = vector.load %arg6[%c0_16, %c0_17] : memref<1x64xf32, #tpu.memory_space<vmem>>, vector<1x64xf32>
    %29 = vector.broadcast %28 : vector<1x64xf32> to vector<8x64xf32>
    %30 = arith.mulf %27, %29 : vector<8x64xf32>
    %cst_18 = arith.constant dense<0.000000e+00> : vector<8xf32>
    %31 = vector.multi_reduction <add>, %30, %cst_18 [1] : vector<8x64xf32> to vector<8xf32>
    %32 = vector.shape_cast %31 : vector<8xf32> to vector<8x1xf32>
    %c0_19 = arith.constant 0 : index
    %c0_20 = arith.constant 0 : index
    %33 = vector.load %arg7[%c0_19, %c0_20] : memref<1x1xf32, #tpu.memory_space<vmem>>, vector<1x1xf32>
    %34 = vector.broadcast %33 : vector<1x1xf32> to vector<8x1xf32>
    %35 = arith.addf %32, %34 : vector<8x1xf32>
    %36 = arith.negf %35 : vector<8x1xf32>
    %37 = math.exp %36 : vector<8x1xf32>
    %cst_21 = arith.constant 1.000000e+00 : f32
    %38 = vector.broadcast %cst_21 : f32 to vector<8x1xf32>
    %39 = arith.addf %38, %37 : vector<8x1xf32>
    %40 = arith.divf %38, %39 : vector<8x1xf32>
    %c0_22 = arith.constant 0 : index
    %c0_23 = arith.constant 0 : index
    %41 = vector.load %arg9[%c0_22, %c0_23] : memref<8x1xf32, #tpu.memory_space<vmem>>, vector<8x1xf32>
    tpu.vector_store %arg9[%c0_22, %c0_23], %40 {strides = array<i32>} : memref<8x1xf32, #tpu.memory_space<vmem>>, vector<8x1xf32>,
    return
  }
  func.func @transform_0(%arg0: i32) -> (i32, i32, i32) {
    %c0_i32 = arith.constant 0 : i32
    %c0_i32_0 = arith.constant 0 : i32
    %c0_i32_1 = arith.constant 0 : i32
    return %c0_i32, %arg0, %c0_i32_0 : i32, i32, i32
  }
  func.func @transform_1(%arg0: i32) -> (i32, i32) {
    %c0_i32 = arith.constant 0 : i32
    %c0_i32_0 = arith.constant 0 : i32
    %c0_i32_1 = arith.constant 0 : i32
    return %c0_i32, %c0_i32_0 : i32, i32
  }
  func.func @transform_2(%arg0: i32) -> (i32, i32) {
    %c0_i32 = arith.constant 0 : i32
    %c0_i32_0 = arith.constant 0 : i32
    %c0_i32_1 = arith.constant 0 : i32
    return %c0_i32, %c0_i32_0 : i32, i32
  }
  func.func @transform_3(%arg0: i32) -> (i32, i32) {
    %c0_i32 = arith.constant 0 : i32
    %c0_i32_0 = arith.constant 0 : i32
    %c0_i32_1 = arith.constant 0 : i32
    return %c0_i32, %c0_i32_0 : i32, i32
  }
  func.func @transform_4(%arg0: i32) -> (i32, i32) {
    %c0_i32 = arith.constant 0 : i32
    %c0_i32_0 = arith.constant 0 : i32
    %c0_i32_1 = arith.constant 0 : i32
    return %c0_i32, %c0_i32_0 : i32, i32
  }
  func.func @transform_5(%arg0: i32) -> (i32, i32) {
    %c0_i32 = arith.constant 0 : i32
    %c0_i32_0 = arith.constant 0 : i32
    %c0_i32_1 = arith.constant 0 : i32
    return %c0_i32, %c0_i32_0 : i32, i32
  }
  func.func @transform_6(%arg0: i32) -> (i32, i32) {
    %c0_i32 = arith.constant 0 : i32
    %c0_i32_0 = arith.constant 0 : i32
    %c0_i32_1 = arith.constant 0 : i32
    return %c0_i32, %c0_i32_0 : i32, i32
  }
  func.func @transform_7(%arg0: i32) -> (i32, i32) {
    %c0_i32 = arith.constant 0 : i32
    %c0_i32_0 = arith.constant 0 : i32
    return %arg0, %c0_i32 : i32, i32
  }
  func.func @transform_8(%arg0: i32) -> (i32, i32) {
    %c0_i32 = arith.constant 0 : i32
    %c0_i32_0 = arith.constant 0 : i32
    return %arg0, %c0_i32 : i32, i32
  }
}

</mosaic_0001>

<llo_original>
// kernel: attacker_siamese2_forward.1
$region0: #{attacker_siamese2_forward.1}
  #allocation0 [shape = 'u32[]', space=smem, size = 0x4, offset = 0x4, fixed_abs, tag = 'smem constant byte address 0x4 - core index']
  #allocation1 [shape = 'u32[144,128]{1,0:T(1,128)}', space=vmem, size = 0x12000, scoped, tag = 'internal scratch']
  #allocation2 [shape = 'f32[1,1]{1,0:T(1,128)S(1)}', space=vmem, size = 0x200, scoped, tag = 'scoped memory for attacker_siamese2_forward.1']
  %s0 = inlined_call_operand.vmem [shape: f32[2,8,32], index: 0, kind: input, shape index: {}]
  %s1 = inlined_call_operand.vmem [shape: bf16[32,256], index: 1, kind: input, shape index: {}]
  %s2 = inlined_call_operand.vmem [shape: f32[1,256], index: 2, kind: input, shape index: {}]
  %s3 = inlined_call_operand.vmem [shape: bf16[256,64], index: 3, kind: input, shape index: {}]
  %s4 = inlined_call_operand.vmem [shape: f32[1,64], index: 4, kind: input, shape index: {}]
  %s5 = inlined_call_operand.vmem [shape: f32[1,64], index: 5, kind: input, shape index: {}]
  %s6 = inlined_call_operand.<no memory space> [shape: f32[1,1], index: 6, kind: input, shape index: {}]
  %s7 = inlined_call_operand.vmem [shape: f32[8,128], index: 7, kind: output, shape index: {0}]
  %s8 = inlined_call_operand.vmem [shape: f32[8,1], index: 8, kind: output, shape index: {1}]
  %9 = xla_tuple %s7, %s8
  %s10 = sld [smem:[#allocation0]]
  $region46: #{attacker_siamese2_forward.1} parent=0
    _
  %s12 = ssub.s32 1, %s10
  %s13 = scalar_select 0, %s12, %s10
  %v14 = vstv %s6
  %15 = vst [vmem:[#allocation2] sm:$0x1] %v14
  // Predicated region
  $region2: #{attacker_siamese2_forward.1} parent=0 // pred_check
    _
  $region3: #{attacker_siamese2_forward.1} parent=0 // pred_check_branch
    %17 = sbr.rel (0) target = $region5
  $region4: #{attacker_siamese2_forward.1} parent=0 // pred_region
    _
  $region5: #{attacker_siamese2_forward.1} parent=0 // pred_fallthru
    _
  // Predicated region
  $region6: #{attacker_siamese2_forward.1} parent=0 // pred_check
    _
  $region7: #{attacker_siamese2_forward.1} parent=0 // pred_check_branch
    %19 = sbr.rel (0) target = $region9
  $region8: #{attacker_siamese2_forward.1} parent=0 // pred_region
    _
  $region9: #{attacker_siamese2_forward.1} parent=0 // pred_fallthru
    _
  // Predicated region
  $region10: #{attacker_siamese2_forward.1} parent=0 // pred_check
    _
  $region11: #{attacker_siamese2_forward.1} parent=0 // pred_check_branch
    %21 = sbr.rel (0) target = $region13
  $region12: #{attacker_siamese2_forward.1} parent=0 // pred_region
    _
  $region13: #{attacker_siamese2_forward.1} parent=0 // pred_fallthru
    _
  // Predicated region
  $region14: #{attacker_siamese2_forward.1} parent=0 // pred_check
    _
  $region15: #{attacker_siamese2_forward.1} parent=0 // pred_check_branch
    %23 = sbr.rel (0) target = $region17
  $region16: #{attacker_siamese2_forward.1} parent=0 // pred_region
    _
  $region17: #{attacker_siamese2_forward.1} parent=0 // pred_fallthru
    _
  // Predicated region
  $region18: #{attacker_siamese2_forward.1} parent=0 // pred_check
    _
  $region19: #{attacker_siamese2_forward.1} parent=0 // pred_check_branch
    %25 = sbr.rel (0) target = $region21
  $region20: #{attacker_siamese2_forward.1} parent=0 // pred_region
    _
  $region21: #{attacker_siamese2_forward.1} parent=0 // pred_fallthru
    _
  // Predicated region
  $region22: #{attacker_siamese2_forward.1} parent=0 // pred_check
    _
  $region23: #{attacker_siamese2_forward.1} parent=0 // pred_check_branch
    %27 = sbr.rel (0) target = $region25
  $region24: #{attacker_siamese2_forward.1} parent=0 // pred_region
    _
  $region25: #{attacker_siamese2_forward.1} parent=0 // pred_fallthru
    _
  // Predicated region
  $region26: #{attacker_siamese2_forward.1} parent=0 // pred_check
    _
  $region27: #{attacker_siamese2_forward.1} parent=0 // pred_check_branch
    %29 = sbr.rel (0) target = $region29
  $region28: #{attacker_siamese2_forward.1} parent=0 // pred_region
    _
  $region29: #{attacker_siamese2_forward.1} parent=0 // pred_fallthru
    _
  %v31 = vld [vmem:[%s0] sm:$0xff]
  %v32 = vld [vmem:[%s0 + $0x8] sm:$0xff]
  %v33 = vpack.c.bf16 %v32, %v31
  %v34 = vld [vmem:[%s1] sm:$0xff]
  %v35 = vld [vmem:[%s1 + $0x8] sm:$0xff]
  %v36 = vld [vmem:[%s1 + $0x10] sm:$0xff]
  %v37 = vld [vmem:[%s1 + $0x18] sm:$0xff]
  %v38 = vld [vmem:[%s2] sm:$0x3]
  %v40 = vlaneseq
  %v41 = vshrl.u32 %v40, 7
  %v42 = vsub.s32 0, %v41
  %v43 = vrot.slane %v38, %v42
  %v44 = vlaneseq
  %v45 = vshrl.u32 %v44, 7
  %v46 = vsub.s32 1, %v45
  %v47 = vrot.slane %v38, %v46
  %v54 = vunpack.c.l.b16 %v34
  %v55 = vunpack.c.h.b16 %v34
  %v56 = vunpack.c.l.b16 %v35
  %v57 = vunpack.c.h.b16 %v35
  %v58 = vunpack.c.l.b16 %v36
  %v59 = vunpack.c.h.b16 %v36
  %v60 = vunpack.c.l.b16 %v37
  %v61 = vunpack.c.h.b16 %v37
  %v62 = vpack.c.b16 %v56, %v54
  %v63 = vpack.c.b16 %v57, %v55
  %v64 = vpack.c.b16 %v60, %v58
  %v65 = vpack.c.b16 %v61, %v59
  %vm70 = vcmask 261120
  %v72 = vsel %vm70, %v33, 0
  %74 = vmatprep.subr.bf16.mxu0 0
  %75 = vmatpush1.bf16.msra.mxu0 0
  %76 = vmatprep.subr.bf16.mxu0 0
  %77 = vmatpush1.bf16.msra.mxu0 0
  %78 = vmatprep.subr.bf16.mxu0 0
  %79 = vmatpush1.bf16.msra.mxu0 0
  %80 = vmatprep.subr.bf16.mxu0 0
  %81 = vmatpush1.bf16.msra.mxu0 0
  %82 = vmatprep.subr.bf16.mxu0 0
  %83 = vmatpush1.bf16.msra.mxu0 0
  %84 = vmatprep.subr.bf16.mxu0 0
  %85 = vmatpush1.bf16.msra.mxu0 0
  %86 = vmatprep.subr.bf16.mxu0 %v65
  %87 = vmatpush1.bf16.msra.mxu0 %v64
  %88 = vmatprep.subr.bf16.mxu0 %v63
  %89 = vmatpush1.bf16.msra.mxu0 %v62
  %90 = vmatprep.subr.bf16.mxu0 0
  %91 = vmatpush2.bf16.msra.mxu0 0
  %92 = vmatprep.subr.bf16.mxu0 0
  %93 = vmatpush2.bf16.msra.mxu0 0
  %94 = vmatprep.subr.bf16.mxu0 0
  %95 = vmatpush2.bf16.msra.mxu0 0
  %96 = vmatprep.subr.bf16.mxu0 0
  %97 = vmatpush2.bf16.msra.mxu0 0
  %98 = vmatprep.subr.bf16.mxu0 0
  %99 = vmatpush2.bf16.msra.mxu0 0
  %100 = vmatprep.subr.bf16.mxu0 0
  %101 = vmatpush2.bf16.msra.mxu0 0
  %102 = vmatprep.subr.bf16.mxu0 0
  %103 = vmatpush2.bf16.msra.mxu0 0
  %104 = vmatprep.subr.bf16.mxu0 0
  %105 = vmatpush2.bf16.msra.mxu0 0
  %106 = vmatprep.mubr.bf16.mxu0 0
  %107 = vmatmul.mubr.bf16.gmra.mxu0 %v72
  %v108 = vpop.f32.mrf.mxu0
  %v109 = vadd.f32 %v43, %v108
  %v110 = vpop.f32.mrf.mxu0
  %v111 = vadd.f32 %v47, %v110
  %v112 = vpop.f32.mrf.mxu0
  %v113 = vadd.f32 %v43, %v112
  %v114 = vpop.f32.mrf.mxu0
  %v115 = vadd.f32 %v47, %v114
  %116 = vdwg.mxu0
  %v117 = vmax.f32 %v109, 0.0
  %v118 = vmax.f32 %v111, 0.0
  %v119 = vmax.f32 %v113, 0.0
  %v120 = vmax.f32 %v115, 0.0
  %v121 = vpack.c.bf16 %v119, %v117
  %v122 = vpack.c.bf16 %v120, %v118
  %v123 = vld [vmem:[%s3] sm:$0xf]
  %v124 = vld [vmem:[%s3 + $0x4] sm:$0xf]
  %v125 = vld [vmem:[%s3 + $0x8] sm:$0xf]
  %v126 = vld [vmem:[%s3 + $0xc] sm:$0xf]
  %v127 = vld [vmem:[%s3 + $0x10] sm:$0xf]
  %v128 = vld [vmem:[%s3 + $0x14] sm:$0xf]
  %v129 = vld [vmem:[%s3 + $0x18] sm:$0xf]
  %v130 = vld [vmem:[%s3 + $0x1c] sm:$0xf]
  %v131 = vld [vmem:[%s3 + $0x20] sm:$0xf]
  %v132 = vld [vmem:[%s3 + $0x24] sm:$0xf]
  %v133 = vld [vmem:[%s3 + $0x28] sm:$0xf]
  %v134 = vld [vmem:[%s3 + $0x2c] sm:$0xf]
  %v135 = vld [vmem:[%s3 + $0x30] sm:$0xf]
  %v136 = vld [vmem:[%s3 + $0x34] sm:$0xf]
  %v137 = vld [vmem:[%s3 + $0x38] sm:$0xf]
  %v138 = vld [vmem:[%s3 + $0x3c] sm:$0xf]
  %v139 = vld [vmem:[%s3 + $0x40] sm:$0xf]
  %v140 = vld [vmem:[%s3 + $0x44] sm:$0xf]
  %v141 = vld [vmem:[%s3 + $0x48] sm:$0xf]
  %v142 = vld [vmem:[%s3 + $0x4c] sm:$0xf]
  %v143 = vld [vmem:[%s3 + $0x50] sm:$0xf]
  %v144 = vld [vmem:[%s3 + $0x54] sm:$0xf]
  %v145 = vld [vmem:[%s3 + $0x58] sm:$0xf]
  %v146 = vld [vmem:[%s3 + $0x5c] sm:$0xf]
  %v147 = vld [vmem:[%s3 + $0x60] sm:$0xf]
  %v148 = vld [vmem:[%s3 + $0x64] sm:$0xf]
  %v149 = vld [vmem:[%s3 + $0x68] sm:$0xf]
  %v150 = vld [vmem:[%s3 + $0x6c] sm:$0xf]
  %v151 = vld [vmem:[%s3 + $0x70] sm:$0xf]
  %v152 = vld [vmem:[%s3 + $0x74] sm:$0xf]
  %v153 = vld [vmem:[%s3 + $0x78] sm:$0xf]
  %v154 = vld [vmem:[%s3 + $0x7c] sm:$0xf]
  %v155 = vld [vmem:[%s4] sm:$0x1]
  %v157 = vlaneseq
  %v158 = vshrl.u32 %v157, 7
  %v159 = vsub.s32 0, %v158
  %v160 = vrot.slane %v155, %v159
  %v194 = vunpack.c.l.b16 %v123
  %v195 = vunpack.c.l.b16 %v124
  %v196 = vunpack.c.l.b16 %v125
  %v197 = vunpack.c.l.b16 %v126
  %v198 = vunpack.c.l.b16 %v127
  %v199 = vunpack.c.l.b16 %v128
  %v200 = vunpack.c.l.b16 %v129
  %v201 = vunpack.c.l.b16 %v130
  %v202 = vunpack.c.l.b16 %v131
  %v203 = vunpack.c.l.b16 %v132
  %v204 = vunpack.c.l.b16 %v133
  %v205 = vunpack.c.l.b16 %v134
  %v206 = vunpack.c.l.b16 %v135
  %v207 = vunpack.c.l.b16 %v136
  %v208 = vunpack.c.l.b16 %v137
  %v209 = vunpack.c.l.b16 %v138
  %v210 = vunpack.c.l.b16 %v139
  %v211 = vunpack.c.l.b16 %v140
  %v212 = vunpack.c.l.b16 %v141
  %v213 = vunpack.c.l.b16 %v142
  %v214 = vunpack.c.l.b16 %v143
  %v215 = vunpack.c.l.b16 %v144
  %v216 = vunpack.c.l.b16 %v145
  %v217 = vunpack.c.l.b16 %v146
  %v218 = vunpack.c.l.b16 %v147
  %v219 = vunpack.c.l.b16 %v148
  %v220 = vunpack.c.l.b16 %v149
  %v221 = vunpack.c.l.b16 %v150
  %v222 = vunpack.c.l.b16 %v151
  %v223 = vunpack.c.l.b16 %v152
  %v224 = vunpack.c.l.b16 %v153
  %v225 = vunpack.c.l.b16 %v154
  %v226 = vpack.c.b16 %v195, %v194
  %v227 = vpack.c.b16 %v197, %v196
  %v228 = vpack.c.b16 %v199, %v198
  %v229 = vpack.c.b16 %v201, %v200
  %v230 = vpack.c.b16 %v203, %v202
  %v231 = vpack.c.b16 %v205, %v204
  %v232 = vpack.c.b16 %v207, %v206
  %v233 = vpack.c.b16 %v209, %v208
  %v234 = vpack.c.b16 %v211, %v210
  %v235 = vpack.c.b16 %v213, %v212
  %v236 = vpack.c.b16 %v215, %v214
  %v237 = vpack.c.b16 %v217, %v216
  %v238 = vpack.c.b16 %v219, %v218
  %v239 = vpack.c.b16 %v221, %v220
  %v240 = vpack.c.b16 %v223, %v222
  %v241 = vpack.c.b16 %v225, %v224
  %258 = vmatprep.subr.bf16.mxu0 0
  %259 = vmatpush1.bf16.msra.mxu0 %v233
  %260 = vmatprep.subr.bf16.mxu0 0
  %261 = vmatpush1.bf16.msra.mxu0 %v232
  %262 = vmatprep.subr.bf16.mxu0 0
  %263 = vmatpush1.bf16.msra.mxu0 %v231
  %264 = vmatprep.subr.bf16.mxu0 0
  %265 = vmatpush1.bf16.msra.mxu0 %v230
  %266 = vmatprep.subr.bf16.mxu0 0
  %267 = vmatpush1.bf16.msra.mxu0 %v229
  %268 = vmatprep.subr.bf16.mxu0 0
  %269 = vmatpush1.bf16.msra.mxu0 %v228
  %270 = vmatprep.subr.bf16.mxu0 0
  %271 = vmatpush1.bf16.msra.mxu0 %v227
  %272 = vmatprep.subr.bf16.mxu0 0
  %273 = vmatpush1.bf16.msra.mxu0 %v226
  %274 = vmatprep.subr.bf16.mxu0 0
  %275 = vmatpush2.bf16.msra.mxu0 %v241
  %276 = vmatprep.subr.bf16.mxu0 0
  %277 = vmatpush2.bf16.msra.mxu0 %v240
  %278 = vmatprep.subr.bf16.mxu0 0
  %279 = vmatpush2.bf16.msra.mxu0 %v239
  %280 = vmatprep.subr.bf16.mxu0 0
  %281 = vmatpush2.bf16.msra.mxu0 %v238
  %282 = vmatprep.subr.bf16.mxu0 0
  %283 = vmatpush2.bf16.msra.mxu0 %v237
  %284 = vmatprep.subr.bf16.mxu0 0
  %285 = vmatpush2.bf16.msra.mxu0 %v236
  %286 = vmatprep.subr.bf16.mxu0 0
  %287 = vmatpush2.bf16.msra.mxu0 %v235
  %288 = vmatprep.subr.bf16.mxu0 0
  %289 = vmatpush2.bf16.msra.mxu0 %v234
  %290 = vmatprep.mubr.bf16.mxu0 %v122
  %291 = vmatmul.mubr.bf16.gmra.mxu0 %v121
  %v292 = vpop.f32.mrf.mxu0
  %v293 = vadd.f32 %v160, %v292
  %v294 = vpop.f32.mrf.mxu0
  %v295 = vpop.f32.mrf.mxu0
  %v296 = vadd.f32 %v160, %v295
  %v297 = vpop.f32.mrf.mxu0
  %298 = vdwg.mxu0
  %v299 = vxor.u32 %v293, 2147483648
  %v300 = vxor.u32 %v296, 2147483648
  %v301 = vmul.f32 %v299, 1.442695
  %v302 = vpow.pop %v301
  %v303 = vmul.f32 %v300, 1.442695
  %v304 = vpow.pop %v303
  %v305 = vadd.f32 %v302, 1.0
  %v306 = vadd.f32 %v304, 1.0
  %v307 = vrcp.pop %v305
  %v308 = vmul.f32 1.0, %v307
  %v309 = vrcp.pop %v306
  %v310 = vmul.f32 1.0, %v309
  %vm311 = vcmask 523264
  %312 = vst.msk [vmem:[%s7] sm:$0xff] %vm311, %v308
  %314 = vrot.lane.b32.xlu0 %v310, 64
  %v315 = vpop.permute.xlu0 %314
  %vm317 = vcmask 1048064
  %318 = vst.msk [vmem:[%s7] sm:$0xff] %vm317, %v315
  %v319 = vsub.f32 %v310, %v308
  %v320 = vmul.f32 %v319, %v319
  %v321 = vld [vmem:[%s5] sm:$0x1]
  %v323 = vlaneseq
  %v324 = vshrl.u32 %v323, 7
  %v325 = vsub.s32 0, %v324
  %v326 = vrot.slane %v321, %v325
  %v328 = vmul.f32 %v320, %v326
  %v329 = vsel %vm311, %v328, 0.0
  %330 = vadd.xlane.f32.xlu0 %v329
  %v331 = vpop.xlane.xlu0 %330
  %v332 = vld [vmem:[#allocation2] sm:$0x1]
  %v334 = vlaneseq
  %v335 = vshrl.u32 %v334, 7
  %v336 = vsub.s32 0, %v335
  %v337 = vrot.slane %v332, %v336
  %v339 = vadd.f32 %v331, %v337
  %v340 = vxor.u32 %v339, 2147483648
  %v341 = vmul.f32 %v340, 1.442695
  %v342 = vpow.pop %v341
  %v343 = vadd.f32 %v342, 1.0
  %v344 = vrcp.pop %v343
  %v345 = vmul.f32 1.0, %v344
  %vm346 = vcmask 7168
  %347 = vst.msk [vmem:[%s8] sm:$0xff] %vm346, %v345
  // Predicated region
  $region30: #{attacker_siamese2_forward.1} parent=0 // pred_check
    _
  $region31: #{attacker_siamese2_forward.1} parent=0 // pred_check_branch
    %349 = sbr.rel (0) target = $region33
  $region32: #{attacker_siamese2_forward.1} parent=0 // pred_region
    _
  $region33: #{attacker_siamese2_forward.1} parent=0 // pred_fallthru
    _
  // Predicated region
  $region34: #{attacker_siamese2_forward.1} parent=0 // pred_check
    _
  $region35: #{attacker_siamese2_forward.1} parent=0 // pred_check_branch
    %351 = sbr.rel (0) target = $region37
  $region36: #{attacker_siamese2_forward.1} parent=0 // pred_region
    _
  $region37: #{attacker_siamese2_forward.1} parent=0 // pred_fallthru
    _
  // Predicated region
  $region38: #{attacker_siamese2_forward.1} parent=0 // pred_check
    _
  $region39: #{attacker_siamese2_forward.1} parent=0 // pred_check_branch
    %353 = sbr.rel (0) target = $region41
  $region40: #{attacker_siamese2_forward.1} parent=0 // pred_region
    _
  $region41: #{attacker_siamese2_forward.1} parent=0 // pred_fallthru
    _
  // Predicated region
  $region42: #{attacker_siamese2_forward.1} parent=0 // pred_check
    _
  $region43: #{attacker_siamese2_forward.1} parent=0 // pred_check_branch
    %355 = sbr.rel (0) target = $region45
  $region44: #{attacker_siamese2_forward.1} parent=0 // pred_region
    _
  $region45: #{attacker_siamese2_forward.1} parent=0 // pred_fallthru
    _

</llo_original>
